<compile_context>
chip_gen: v6e
topology: v6e:2x2x1
jax: 0.10.0
libtpu: 0.0.40
codegen_flags: <defaults>
</compile_context>

<pallas_src>
import functools

import jax
import jax.numpy as jnp
from jax.experimental import pallas as pl
from jax.experimental.pallas import tpu as pltpu


# ----------------------------------------------------------------------------
# Kernel: one MultiInputLSTMCell step per grid iteration, state carried in VMEM
# ----------------------------------------------------------------------------
def _lattice_cell_seq_kernel(
    counts_ref,   # (T,) int32, SMEM (scalar prefetch): word-channel count / step
    x_ref,        # (1, 1, D)      f32   char embedding x^c_t
    cin_ref,      # (1, C_MAX, H)  f32   zero-padded word cell states for step t
    h0_ref,       # (1, H)         f32   initial hidden state
    c0_ref,       # (1, H)         f32   initial cell state
    wf_ref,       # (D+H, 4H)      bf16  fused [[W_ih | aW_ih], [W_hh | 0]]  (VMEM resident)
    awhh_ref,     # (H, H)         bf16  alpha_weight_hh                    (VMEM resident)
    b_ref,        # (1, 4H)        f32   fused [bias | alpha_bias]          (VMEM resident)
    h_out_ref,    # (1, 1, H)      f32   h_t output slab
    c_out_ref,    # (1, 1, H)      f32   c_t output slab
    h_state,      # VMEM (1, H)    f32   carried hidden state
    c_state,      # VMEM (1, H)    f32   carried cell state
    xh_scratch,   # VMEM (1, D+H)  f32   [x_t, h_{t-1}] assembly buffer
    *,
    D: int,
    H: int,
    C_MAX: int,
):
    t = pl.program_id(0)

    @pl.when(t == 0)
    def _():
        h_state[...] = h0_ref[...]
        c_state[...] = c0_ref[...]

    count = counts_ref[t]
    h_prev = h_state[...]
    c_prev = c_state[...]

    # ---- one fused MXU push: char gates (i, o, g) + alpha input term -------
    xh_scratch[:, :D] = x_ref[0]
    xh_scratch[:, D:] = h_prev
    xh = xh_scratch[...].astype(jnp.bfloat16)
    gates = jnp.dot(xh, wf_ref[...], preferred_element_type=jnp.float32) + b_ref[...]

    i = jax.nn.sigmoid(gates[:, 0 * H:1 * H])        # (1, H)
    o = jax.nn.sigmoid(gates[:, 1 * H:2 * H])        # (1, H)
    g = jnp.tanh(gates[:, 2 * H:3 * H])              # (1, H)
    alpha_wi = gates[:, 3 * H:4 * H]                 # (1, H) = x @ aW_ih + a_bias

    # ---- word-channel alpha gates (single second MXU push) -----------------
    cin = cin_ref[0]                                 # (C_MAX, H) f32
    alpha_wh = jnp.dot(cin.astype(jnp.bfloat16), awhh_ref[...],
                       preferred_element_type=jnp.float32)
    alpha = jax.nn.sigmoid(alpha_wi + alpha_wh)      # (C_MAX, H)

    # softmax over the rows of concat([i, alpha]); padded rows masked to 0
    row = jax.lax.broadcasted_iota(jnp.int32, (C_MAX, H), 0)
    valid = row < count
    exp_i = jnp.exp(i)                                       # (1, H)
    exp_a = jnp.where(valid, jnp.exp(alpha), 0.0)            # (C_MAX, H)
    inv = pl.reciprocal(exp_i + jnp.sum(exp_a, axis=0, keepdims=True), approx=True)
    c_words = (g * exp_i + jnp.sum(cin * exp_a, axis=0, keepdims=True)) * inv

    # count == 0 branch: plain coupled-gate LSTM update (f = 1 - i)
    c_plain = (1.0 - i) * c_prev + i * g

    keep = (count > 0).astype(jnp.float32)           # exact 0.0 / 1.0 selector
    c1 = keep * c_words + (1.0 - keep) * c_plain
    h1 = o * jnp.tanh(c1)

    h_state[...] = h1
    c_state[...] = c1
    h_out_ref[0] = h1
    c_out_ref[0] = c1


# ----------------------------------------------------------------------------
# pallas_call builder (cached per static shape so each (T, D, H, C) compiles once)
# ----------------------------------------------------------------------------
@functools.lru_cache(maxsize=None)
def _build_seq_fn(T, D, H, c_max):
    kernel = functools.partial(_lattice_cell_seq_kernel, D=D, H=H, C_MAX=c_max)
    grid_spec = pltpu.PrefetchScalarGridSpec(
        num_scalar_prefetch=1,                       # per-step word counts -> SMEM
        grid=(T,),
        in_specs=[
            pl.BlockSpec((1, 1, D), lambda t, cnt: (t, 0, 0)),       # x_seq
            pl.BlockSpec((1, c_max, H), lambda t, cnt: (t, 0, 0)),   # cin_seq
            pl.BlockSpec((1, H), lambda t, cnt: (0, 0)),             # h0
            pl.BlockSpec((1, H), lambda t, cnt: (0, 0)),             # c0
            pl.BlockSpec((D + H, 4 * H), lambda t, cnt: (0, 0)),     # fused weights (resident)
            pl.BlockSpec((H, H), lambda t, cnt: (0, 0)),             # alpha_weight_hh (resident)
            pl.BlockSpec((1, 4 * H), lambda t, cnt: (0, 0)),         # fused bias (resident)
        ],
        out_specs=(
            pl.BlockSpec((1, 1, H), lambda t, cnt: (t, 0, 0)),       # h sequence
            pl.BlockSpec((1, 1, H), lambda t, cnt: (t, 0, 0)),       # c sequence
        ),
        scratch_shapes=[
            pltpu.VMEM((1, H), jnp.float32),       # h carry
            pltpu.VMEM((1, H), jnp.float32),       # c carry
            pltpu.VMEM((1, D + H), jnp.float32),   # [x, h] assembly
        ],
    )
    call = pl.pallas_call(
        kernel,
        out_shape=(jax.ShapeDtypeStruct((T, 1, H), jnp.float32),
                   jax.ShapeDtypeStruct((T, 1, H), jnp.float32)),
        grid_spec=grid_spec,
        compiler_params=pltpu.CompilerParams(
            # Recurrent over time -> "arbitrary".  For multi-sequence batching
            # (e.g. on v7x's two TensorCores) add a leading "parallel" axis.
            dimension_semantics=("arbitrary",),
            # Working set is tiny (<2 MiB); budget well under v7x's 64 MiB VMEM.
            vmem_limit_bytes=32 * 1024 * 1024,
        ),
    )
    return jax.jit(call)


# ----------------------------------------------------------------------------
# Wrappers
# ----------------------------------------------------------------------------
def prepare_params(raw):
    """Build the fused / bf16 weight layout consumed by the kernel."""
    D = raw["weight_ih"].shape[0]
    H = raw["weight_hh"].shape[0]
    top = jnp.concatenate([raw["weight_ih"], raw["alpha_weight_ih"]], axis=1)   # (D, 4H)
    bot = jnp.concatenate(
        [raw["weight_hh"], jnp.zeros((H, H), raw["weight_hh"].dtype)], axis=1)  # (H, 4H)
    return dict(
        input_size=D,
        hidden_size=H,
        w_fused=jnp.concatenate([top, bot], axis=0).astype(jnp.bfloat16),       # (D+H, 4H)
        alpha_whh=raw["alpha_weight_hh"].astype(jnp.bfloat16),                  # (H, H)
        b_fused=jnp.concatenate([raw["bias"], raw["alpha_bias"]],
                                axis=1).astype(jnp.float32),                    # (1, 4H)
    )


def multi_input_lstm_sequence(params, x_seq, cin_seq, counts, hx):
    """Run T MultiInputLSTMCell steps in ONE pallas_call.

    x_seq   : (T, D)        char embeddings
    cin_seq : (T, C_MAX, H) word cell states, zero-padded per step (C_MAX % 8 == 0)
    counts  : (T,) int32    number of valid word channels per step (<= C_MAX)
    hx      : (h_0, c_0), each (1, H)
    returns : (h_seq, c_seq), each (T, H)
    """
    # TODO(synk): a full lattice-LSTM fusion would also run WordLSTMCell in-kernel
    # so cin_seq could be produced from intermediate h; here the padded word cell
    # states are taken as a precomputed input.
    h0, c0 = hx
    T, D = x_seq.shape
    H = params["hidden_size"]
    c_max = cin_seq.shape[1]
    assert c_max % 8 == 0, "pad the word-channel axis to a multiple of 8"
    fn = _build_seq_fn(T, D, H, c_max)
    h_seq, c_seq = fn(
        counts.astype(jnp.int32),
        x_seq.reshape(T, 1, D).astype(jnp.float32),
        cin_seq.astype(jnp.float32),
        h0.astype(jnp.float32),
        c0.astype(jnp.float32),
        params["w_fused"],
        params["alpha_whh"],
        params["b_fused"],
    )
    return h_seq.reshape(T, H), c_seq.reshape(T, H)


def multi_input_lstm_cell(params, input_, c_input, hx, c_max=8):
    """Single-step API matching MultiInputLSTMCell.forward (batch_size == 1)."""
    h0, c0 = hx
    assert h0.shape[0] == 1, "only batch_size == 1 is supported"
    H = params["hidden_size"]
    c_num = len(c_input)
    assert c_num <= c_max, "increase c_max (multiple of 8) for more word channels"
    if c_num > 0:
        cin = jnp.concatenate([c.reshape(1, H) for c in c_input], axis=0)
        cin = jnp.pad(cin, ((0, c_max - c_num), (0, 0)))
    else:
        cin = jnp.zeros((c_max, H), jnp.float32)
    counts = jnp.full((1,), c_num, jnp.int32)
    h_seq, c_seq = multi_input_lstm_sequence(
        params, input_.reshape(1, -1), cin[None].astype(jnp.float32), counts, (h0, c0))
    return h_seq, c_seq          # each (1, H)


# ----------------------------------------------------------------------------
# Deterministic parameter init (mirrors reset_parameters)
# ----------------------------------------------------------------------------
def init_params(key, input_size, hidden_size):
    k1, k2 = jax.random.split(key)
    ortho = jax.nn.initializers.orthogonal()
    weight_ih = ortho(k1, (input_size, 3 * hidden_size), jnp.float32)
    alpha_weight_ih = ortho(k2, (input_size, hidden_size), jnp.float32)
    eye = jnp.eye(hidden_size, dtype=jnp.float32)
    return dict(
        weight_ih=weight_ih,
        weight_hh=jnp.tile(eye, (1, 3)),
        alpha_weight_ih=alpha_weight_ih,
        alpha_weight_hh=eye,
        bias=jnp.zeros((1, 3 * hidden_size), jnp.float32),
        alpha_bias=jnp.zeros((1, hidden_size), jnp.float32),
    )


# ----------------------------------------------------------------------------
# Pure-JAX reference of the original (f32) forward; mirror_bf16=True replays the
# kernel's precision choices (bf16 weights / MXU operands, f32 everything else).
# ----------------------------------------------------------------------------
def reference_cell(params, input_, c_input, hx, mirror_bf16=False):
    def q(a):
        return a.astype(jnp.bfloat16).astype(jnp.float32) if mirror_bf16 else a

    h0, c0 = hx
    H = params["weight_hh"].shape[0]
    wh_b = q(h0) @ q(params["weight_hh"]) + params["bias"]
    wi = q(input_) @ q(params["weight_ih"])
    gates = wh_b + wi
    i = jax.nn.sigmoid(gates[:, :H])
    o = jax.nn.sigmoid(gates[:, H:2 * H])
    g = jnp.tanh(gates[:, 2 * H:])
    if len(c_input) == 0:
        f = 1.0 - i
        c1 = f * c0 + i * g
        return o * jnp.tanh(c1), c1
    cin = jnp.concatenate(c_input, 0).squeeze(1)
    alpha_wi = q(input_) @ q(params["alpha_weight_ih"]) + params["alpha_bias"]
    alpha_wh = q(cin) @ q(params["alpha_weight_hh"])
    alpha = jax.nn.sigmoid(alpha_wi + alpha_wh)
    alpha = jnp.exp(jnp.concatenate([i, alpha], 0))
    alpha = alpha / alpha.sum(0)
    merge = jnp.concatenate([g, cin], 0)
    c1 = (merge * alpha).sum(0, keepdims=True)
    return o * jnp.tanh(c1), c1


# ----------------------------------------------------------------------------
if __name__ == "__main__":
    INPUT_SIZE = 128
    HIDDEN_SIZE = 128
    C_MAX = 8
    T = 8

    key = jax.random.PRNGKey(0)
    kp, kx, kh, kc, kw, ks = jax.random.split(key, 6)

    raw = init_params(kp, INPUT_SIZE, HIDDEN_SIZE)
    params = prepare_params(raw)

    input_ = jax.random.normal(kx, (1, INPUT_SIZE), jnp.float32)
    h0 = jax.random.normal(kh, (1, HIDDEN_SIZE), jnp.float32)
    c0 = jax.random.normal(kc, (1, HIDDEN_SIZE), jnp.float32)
    c_input = [
        jax.random.normal(jax.random.fold_in(kw, n), (1, 1, HIDDEN_SIZE), jnp.float32)
        for n in range(4)
    ]

    # ---- single step, with word channels (c_num > 0) -----------------------
    h1, c1 = multi_input_lstm_cell(params, input_, c_input, (h0, c0))
    jax.block_until_ready((h1, c1))
    h1r, c1r = reference_cell(raw, input_, c_input, (h0, c0))
    # tolerance covers bf16 weights + approx reciprocal
    assert jnp.allclose(h1, h1r, atol=5e-2, rtol=5e-2)
    assert jnp.allclose(c1, c1r, atol=5e-2, rtol=5e-2)

    # ---- single step, no word channels (c_num == 0) ------------------------
    h1b, c1b = multi_input_lstm_cell(params, input_, [], (h0, c0))
    jax.block_until_ready((h1b, c1b))
    h1br, c1br = reference_cell(raw, input_, [], (h0, c0))
    assert jnp.allclose(h1b, h1br, atol=5e-2, rtol=5e-2)
    assert jnp.allclose(c1b, c1br, atol=5e-2, rtol=5e-2)

    # ---- fused sequence: T steps in one pallas_call, varying word counts ---
    x_seq = jax.random.normal(ks, (T, INPUT_SIZE), jnp.float32)
    cin_seq = jax.random.normal(jax.random.fold_in(ks, 1),
                                (T, C_MAX, HIDDEN_SIZE), jnp.float32)
    counts_list = [3, 0, 5, 1, 0, 8, 2, 4]
    counts = jnp.array(counts_list, jnp.int32)

    h_seq, c_seq = multi_input_lstm_sequence(params, x_seq, cin_seq, counts, (h0, c0))
    jax.block_until_ready((h_seq, c_seq))

    # step-by-step reference with mirrored precision (bf16 weights / MXU inputs)
    h, c = h0, c0
    for t in range(T):
        cl = [cin_seq[t, k].reshape(1, 1, HIDDEN_SIZE) for k in range(counts_list[t])]
        h, c = reference_cell(raw, x_seq[t].reshape(1, -1), cl, (h, c), mirror_bf16=True)
        assert jnp.allclose(h_seq[t:t + 1], h, atol=3e-2, rtol=3e-2)
        assert jnp.allclose(c_seq[t:t + 1], c, atol=3e-2, rtol=3e-2)

    print("KERNEL_OK")
</pallas_src>

<mosaic_0001>
module attributes {stable_mosaic.version = 11 : i64} {
  func.func @_lattice_cell_seq_kernel(%arg0: i32, %arg1: memref<1xi32, #tpu.memory_space<smem>>, %arg2: memref<1x1x128xf32, #tpu.memory_space<vmem>>, %arg3: memref<1x8x128xf32, #tpu.memory_space<vmem>>, %arg4: memref<1x128xf32, #tpu.memory_space<vmem>>, %arg5: memref<1x128xf32, #tpu.memory_space<vmem>>, %arg6: memref<256x512xbf16, #tpu.memory_space<vmem>>, %arg7: memref<128x128xbf16, #tpu.memory_space<vmem>>, %arg8: memref<1x512xf32, #tpu.memory_space<vmem>>, %arg9: memref<1x1x128xf32, #tpu.memory_space<vmem>>, %arg10: memref<1x1x128xf32, #tpu.memory_space<vmem>>, %arg11: memref<1x128xf32, #tpu.memory_space<vmem>>, %arg12: memref<1x128xf32, #tpu.memory_space<vmem>>, %arg13: memref<1x256xf32, #tpu.memory_space<vmem>>) attributes {dimension_semantics = [#tpu.dimension_semantics<arbitrary>], iteration_bounds = array<i64: 1>, scalar_prefetch = 1 : i64, scratch_operands = 3 : i64, tpu.core_type = #tpu.core_type<tc>, window_params = [{transform_indices = @transform_0, window_bounds = array<i64: 1, 1, 128>}, {transform_indices = @transform_1, window_bounds = array<i64: 1, 8, 128>}, {pipeline_mode = #tpu.pipeline_mode<synchronous>, transform_indices = @transform_2, window_bounds = array<i64: 1, 128>}, {pipeline_mode = #tpu.pipeline_mode<synchronous>, transform_indices = @transform_3, window_bounds = array<i64: 1, 128>}, {pipeline_mode = #tpu.pipeline_mode<synchronous>, transform_indices = @transform_4, window_bounds = array<i64: 256, 512>}, {pipeline_mode = #tpu.pipeline_mode<synchronous>, transform_indices = @transform_5, window_bounds = array<i64: 128, 128>}, {pipeline_mode = #tpu.pipeline_mode<synchronous>, transform_indices = @transform_6, window_bounds = array<i64: 1, 512>}, {transform_indices = @transform_7, window_bounds = array<i64: 1, 1, 128>}, {transform_indices = @transform_8, window_bounds = array<i64: 1, 1, 128>}]} {
    %c0_i32 = arith.constant 0 : i32
    %0 = arith.cmpi eq, %arg0, %c0_i32 : i32
    %1 = arith.extui %0 : i1 to i32
    %c0_i32_0 = arith.constant 0 : i32
    %2 = arith.cmpi ne, %1, %c0_i32_0 : i32
    scf.if %2 {
      %c0_41 = arith.constant 0 : index
      %c0_42 = arith.constant 0 : index
      %85 = vector.load %arg4[%c0_41, %c0_42] : memref<1x128xf32, #tpu.memory_space<vmem>>, vector<1x128xf32>
      %c0_43 = arith.constant 0 : index
      %c0_44 = arith.constant 0 : index
      %86 = vector.load %arg11[%c0_43, %c0_44] : memref<1x128xf32, #tpu.memory_space<vmem>>, vector<1x128xf32>
      tpu.vector_store %arg11[%c0_43, %c0_44], %85 {strides = array<i32>} : memref<1x128xf32, #tpu.memory_space<vmem>>, vector<1x128xf32>,
      %c0_45 = arith.constant 0 : index
      %c0_46 = arith.constant 0 : index
      %87 = vector.load %arg5[%c0_45, %c0_46] : memref<1x128xf32, #tpu.memory_space<vmem>>, vector<1x128xf32>
      %c0_47 = arith.constant 0 : index
      %c0_48 = arith.constant 0 : index
      %88 = vector.load %arg12[%c0_47, %c0_48] : memref<1x128xf32, #tpu.memory_space<vmem>>, vector<1x128xf32>
      tpu.vector_store %arg12[%c0_47, %c0_48], %87 {strides = array<i32>} : memref<1x128xf32, #tpu.memory_space<vmem>>, vector<1x128xf32>,
    } else {
    }
    %3 = arith.index_cast %arg0 : i32 to index
    %4 = memref.load %arg1[%3] : memref<1xi32, #tpu.memory_space<smem>>
    %c0 = arith.constant 0 : index
    %c0_1 = arith.constant 0 : index
    %5 = vector.load %arg11[%c0, %c0_1] : memref<1x128xf32, #tpu.memory_space<vmem>>, vector<1x128xf32>
    %c0_2 = arith.constant 0 : index
    %c0_3 = arith.constant 0 : index
    %6 = vector.load %arg12[%c0_2, %c0_3] : memref<1x128xf32, #tpu.memory_space<vmem>>, vector<1x128xf32>
    %c0_4 = arith.constant 0 : index
    %c0_5 = arith.constant 0 : index
    %c0_6 = arith.constant 0 : index
    %7 = vector.load %arg2[%c0_4, %c0_5, %c0_6] : memref<1x1x128xf32, #tpu.memory_space<vmem>>, vector<1x1x128xf32>
    %8 = vector.shape_cast %7 : vector<1x1x128xf32> to vector<1x128xf32>
    %c0_7 = arith.constant 0 : index
    %c0_8 = arith.constant 0 : index
    %9 = vector.load %arg13[%c0_7, %c0_8] : memref<1x256xf32, #tpu.memory_space<vmem>>, vector<1x128xf32>
    tpu.vector_store %arg13[%c0_7, %c0_8], %8 {strides = array<i32>} : memref<1x256xf32, #tpu.memory_space<vmem>>, vector<1x128xf32>,
    %c0_9 = arith.constant 0 : index
    %c128 = arith.constant 128 : index
    %10 = vector.load %arg13[%c0_9, %c128] : memref<1x256xf32, #tpu.memory_space<vmem>>, vector<1x128xf32>
    tpu.vector_store %arg13[%c0_9, %c128], %5 {strides = array<i32>} : memref<1x256xf32, #tpu.memory_space<vmem>>, vector<1x128xf32>,
    %c0_10 = arith.constant 0 : index
    %c0_11 = arith.constant 0 : index
    %11 = vector.load %arg13[%c0_10, %c0_11] : memref<1x256xf32, #tpu.memory_space<vmem>>, vector<1x256xf32>
    %12 = arith.truncf %11 : vector<1x256xf32> to vector<1x256xbf16>
    %c0_12 = arith.constant 0 : index
    %c0_13 = arith.constant 0 : index
    %13 = vector.load %arg6[%c0_12, %c0_13] : memref<256x512xbf16, #tpu.memory_space<vmem>>, vector<256x512xbf16>
    %cst = arith.constant dense<0.000000e+00> : vector<1x512xf32>
    %14 = tpu.matmul %12, %13, %cst {dimension_numbers = #tpu.dot_dimension_numbers<[1], [0], [0], [1], [0, 0, 1, 1], [], []>} : vector<1x256xbf16>, vector<256x512xbf16>, vector<1x512xf32> -> vector<1x512xf32>
    %c0_14 = arith.constant 0 : index
    %c0_15 = arith.constant 0 : index
    %15 = vector.load %arg8[%c0_14, %c0_15] : memref<1x512xf32, #tpu.memory_space<vmem>>, vector<1x512xf32>
    %16 = arith.addf %14, %15 : vector<1x512xf32>
    %17 = vector.extract_strided_slice %16 {offsets = [0, 0], sizes = [1, 128], strides = [1, 1]} : vector<1x512xf32> to vector<1x128xf32>
    %18 = arith.negf %17 : vector<1x128xf32>
    %19 = math.exp %18 : vector<1x128xf32>
    %cst_16 = arith.constant 1.000000e+00 : f32
    %20 = vector.broadcast %cst_16 : f32 to vector<1x128xf32>
    %21 = arith.addf %20, %19 : vector<1x128xf32>
    %22 = arith.divf %20, %21 : vector<1x128xf32>
    %23 = vector.extract_strided_slice %16 {offsets = [0, 128], sizes = [1, 128], strides = [1, 1]} : vector<1x512xf32> to vector<1x128xf32>
    %24 = arith.negf %23 : vector<1x128xf32>
    %25 = math.exp %24 : vector<1x128xf32>
    %cst_17 = arith.constant 1.000000e+00 : f32
    %26 = vector.broadcast %cst_17 : f32 to vector<1x128xf32>
    %27 = arith.addf %26, %25 : vector<1x128xf32>
    %28 = arith.divf %26, %27 : vector<1x128xf32>
    %29 = vector.extract_strided_slice %16 {offsets = [0, 256], sizes = [1, 128], strides = [1, 1]} : vector<1x512xf32> to vector<1x128xf32>
    %30 = math.tanh %29 : vector<1x128xf32>
    %31 = vector.extract_strided_slice %16 {offsets = [0, 384], sizes = [1, 128], strides = [1, 1]} : vector<1x512xf32> to vector<1x128xf32>
    %c0_18 = arith.constant 0 : index
    %c0_19 = arith.constant 0 : index
    %c0_20 = arith.constant 0 : index
    %32 = vector.load %arg3[%c0_18, %c0_19, %c0_20] : memref<1x8x128xf32, #tpu.memory_space<vmem>>, vector<1x8x128xf32>
    %33 = vector.shape_cast %32 : vector<1x8x128xf32> to vector<8x128xf32>
    %34 = arith.truncf %33 : vector<8x128xf32> to vector<8x128xbf16>
    %c0_21 = arith.constant 0 : index
    %c0_22 = arith.constant 0 : index
    %35 = vector.load %arg7[%c0_21, %c0_22] : memref<128x128xbf16, #tpu.memory_space<vmem>>, vector<128x128xbf16>
    %cst_23 = arith.constant dense<0.000000e+00> : vector<8x128xf32>
    %36 = tpu.matmul %34, %35, %cst_23 {dimension_numbers = #tpu.dot_dimension_numbers<[1], [0], [0], [1], [0, 0, 1, 1], [], []>} : vector<8x128xbf16>, vector<128x128xbf16>, vector<8x128xf32> -> vector<8x128xf32>
    %37 = vector.broadcast %31 : vector<1x128xf32> to vector<8x128xf32>
    %38 = arith.addf %37, %36 : vector<8x128xf32>
    %39 = arith.negf %38 : vector<8x128xf32>
    %40 = math.exp %39 : vector<8x128xf32>
    %cst_24 = arith.constant 1.000000e+00 : f32
    %41 = vector.broadcast %cst_24 : f32 to vector<8x128xf32>
    %42 = arith.addf %41, %40 : vector<8x128xf32>
    %43 = arith.divf %41, %42 : vector<8x128xf32>
    %44 = tpu.iota {dimensions = array<i32: 0>} : vector<8x128xi32>
    %45 = vector.broadcast %4 : i32 to vector<8x128xi32>
    %46 = arith.cmpi slt, %44, %45 : vector<8x128xi32>
    %47 = math.exp %22 : vector<1x128xf32>
    %48 = math.exp %43 : vector<8x128xf32>
    %cst_25 = arith.constant 0.000000e+00 : f32
    %49 = vector.broadcast %cst_25 : f32 to vector<8x128xf32>
    %50 = arith.select %46, %48, %49 : vector<8x128xi1>, vector<8x128xf32>
    %cst_26 = arith.constant dense<0.000000e+00> : vector<128xf32>
    %51 = vector.multi_reduction <add>, %50, %cst_26 [0] : vector<8x128xf32> to vector<128xf32>
    %52 = vector.shape_cast %51 : vector<128xf32> to vector<1x128xf32>
    %53 = arith.addf %47, %52 : vector<1x128xf32>
    %54 = tpu.reciprocal %53 {approx = true} : vector<1x128xf32> -> vector<1x128xf32>
    %55 = arith.mulf %30, %47 : vector<1x128xf32>
    %56 = arith.mulf %33, %50 : vector<8x128xf32>
    %cst_27 = arith.constant dense<0.000000e+00> : vector<128xf32>
    %57 = vector.multi_reduction <add>, %56, %cst_27 [0] : vector<8x128xf32> to vector<128xf32>
    %58 = vector.shape_cast %57 : vector<128xf32> to vector<1x128xf32>
    %59 = arith.addf %55, %58 : vector<1x128xf32>
    %60 = arith.mulf %59, %54 : vector<1x128xf32>
    %cst_28 = arith.constant 1.000000e+00 : f32
    %61 = vector.broadcast %cst_28 : f32 to vector<1x128xf32>
    %62 = arith.subf %61, %22 : vector<1x128xf32>
    %63 = arith.mulf %62, %6 : vector<1x128xf32>
    %64 = arith.mulf %22, %30 : vector<1x128xf32>
    %65 = arith.addf %63, %64 : vector<1x128xf32>
    %c0_i32_29 = arith.constant 0 : i32
    %66 = arith.cmpi sgt, %4, %c0_i32_29 : i32
    %67 = arith.extui %66 : i1 to i32
    %68 = arith.sitofp %67 : i32 to f32
    %69 = vector.broadcast %68 : f32 to vector<1x128xf32>
    %70 = arith.mulf %69, %60 : vector<1x128xf32>
    %cst_30 = arith.constant 1.000000e+00 : f32
    %71 = arith.subf %cst_30, %68 : f32
    %72 = vector.broadcast %71 : f32 to vector<1x128xf32>
    %73 = arith.mulf %72, %65 : vector<1x128xf32>
    %74 = arith.addf %70, %73 : vector<1x128xf32>
    %75 = math.tanh %74 : vector<1x128xf32>
    %76 = arith.mulf %28, %75 : vector<1x128xf32>
    %c0_31 = arith.constant 0 : index
    %c0_32 = arith.constant 0 : index
    %77 = vector.load %arg11[%c0_31, %c0_32] : memref<1x128xf32, #tpu.memory_space<vmem>>, vector<1x128xf32>
    tpu.vector_store %arg11[%c0_31, %c0_32], %76 {strides = array<i32>} : memref<1x128xf32, #tpu.memory_space<vmem>>, vector<1x128xf32>,
    %c0_33 = arith.constant 0 : index
    %c0_34 = arith.constant 0 : index
    %78 = vector.load %arg12[%c0_33, %c0_34] : memref<1x128xf32, #tpu.memory_space<vmem>>, vector<1x128xf32>
    tpu.vector_store %arg12[%c0_33, %c0_34], %74 {strides = array<i32>} : memref<1x128xf32, #tpu.memory_space<vmem>>, vector<1x128xf32>,
    %c0_35 = arith.constant 0 : index
    %c0_36 = arith.constant 0 : index
    %c0_37 = arith.constant 0 : index
    %79 = vector.load %arg9[%c0_35, %c0_36, %c0_37] : memref<1x1x128xf32, #tpu.memory_space<vmem>>, vector<1x1x128xf32>
    %80 = vector.shape_cast %79 : vector<1x1x128xf32> to vector<1x128xf32>
    %81 = vector.shape_cast %76 : vector<1x128xf32> to vector<1x1x128xf32>
    tpu.vector_store %arg9[%c0_35, %c0_36, %c0_37], %81 {strides = array<i32>} : memref<1x1x128xf32, #tpu.memory_space<vmem>>, vector<1x1x128xf32>,
    %c0_38 = arith.constant 0 : index
    %c0_39 = arith.constant 0 : index
    %c0_40 = arith.constant 0 : index
    %82 = vector.load %arg10[%c0_38, %c0_39, %c0_40] : memref<1x1x128xf32, #tpu.memory_space<vmem>>, vector<1x1x128xf32>
    %83 = vector.shape_cast %82 : vector<1x1x128xf32> to vector<1x128xf32>
    %84 = vector.shape_cast %74 : vector<1x128xf32> to vector<1x1x128xf32>
    tpu.vector_store %arg10[%c0_38, %c0_39, %c0_40], %84 {strides = array<i32>} : memref<1x1x128xf32, #tpu.memory_space<vmem>>, vector<1x1x128xf32>,
    return
  }
  func.func @transform_0(%arg0: i32, %arg1: memref<1xi32, #tpu.memory_space<smem>>) -> (i32, i32, i32) {
    %c0_i32 = arith.constant 0 : i32
    %c0_i32_0 = arith.constant 0 : i32
    %c0_i32_1 = arith.constant 0 : i32
    return %arg0, %c0_i32, %c0_i32_0 : i32, i32, i32
  }
  func.func @transform_1(%arg0: i32, %arg1: memref<1xi32, #tpu.memory_space<smem>>) -> (i32, i32, i32) {
    %c0_i32 = arith.constant 0 : i32
    %c0_i32_0 = arith.constant 0 : i32
    %c0_i32_1 = arith.constant 0 : i32
    return %arg0, %c0_i32, %c0_i32_0 : i32, i32, i32
  }
  func.func @transform_2(%arg0: i32, %arg1: memref<1xi32, #tpu.memory_space<smem>>) -> (i32, i32) {
    %c0_i32 = arith.constant 0 : i32
    %c0_i32_0 = arith.constant 0 : i32
    %c0_i32_1 = arith.constant 0 : i32
    return %c0_i32, %c0_i32_0 : i32, i32
  }
  func.func @transform_3(%arg0: i32, %arg1: memref<1xi32, #tpu.memory_space<smem>>) -> (i32, i32) {
    %c0_i32 = arith.constant 0 : i32
    %c0_i32_0 = arith.constant 0 : i32
    %c0_i32_1 = arith.constant 0 : i32
    return %c0_i32, %c0_i32_0 : i32, i32
  }
  func.func @transform_4(%arg0: i32, %arg1: memref<1xi32, #tpu.memory_space<smem>>) -> (i32, i32) {
    %c0_i32 = arith.constant 0 : i32
    %c0_i32_0 = arith.constant 0 : i32
    %c0_i32_1 = arith.constant 0 : i32
    return %c0_i32, %c0_i32_0 : i32, i32
  }
  func.func @transform_5(%arg0: i32, %arg1: memref<1xi32, #tpu.memory_space<smem>>) -> (i32, i32) {
    %c0_i32 = arith.constant 0 : i32
    %c0_i32_0 = arith.constant 0 : i32
    %c0_i32_1 = arith.constant 0 : i32
    return %c0_i32, %c0_i32_0 : i32, i32
  }
  func.func @transform_6(%arg0: i32, %arg1: memref<1xi32, #tpu.memory_space<smem>>) -> (i32, i32) {
    %c0_i32 = arith.constant 0 : i32
    %c0_i32_0 = arith.constant 0 : i32
    %c0_i32_1 = arith.constant 0 : i32
    return %c0_i32, %c0_i32_0 : i32, i32
  }
  func.func @transform_7(%arg0: i32, %arg1: memref<1xi32, #tpu.memory_space<smem>>) -> (i32, i32, i32) {
    %c0_i32 = arith.constant 0 : i32
    %c0_i32_0 = arith.constant 0 : i32
    %c0_i32_1 = arith.constant 0 : i32
    return %arg0, %c0_i32, %c0_i32_0 : i32, i32, i32
  }
  func.func @transform_8(%arg0: i32, %arg1: memref<1xi32, #tpu.memory_space<smem>>) -> (i32, i32, i32) {
    %c0_i32 = arith.constant 0 : i32
    %c0_i32_0 = arith.constant 0 : i32
    %c0_i32_1 = arith.constant 0 : i32
    return %arg0, %c0_i32, %c0_i32_0 : i32, i32, i32
  }
}

</mosaic_0001>

<llo_original>
// kernel: tpu_custom_call.1
$region0: #{tpu_custom_call.1}
  #allocation0 [shape = 'u32[]', space=smem, size = 0x4, offset = 0x4, fixed_abs, tag = 'smem constant byte address 0x4 - core index']
  #allocation1 [shape = 'u32[144,128]{1,0:T(1,128)}', space=vmem, size = 0x12000, scoped, tag = 'internal scratch']
  #allocation2 [shape = 'f32[1,128]{1,0:T(1,128)}', space=vmem, size = 0x200, scoped, tag = 'scratch operand']
  #allocation3 [shape = 'f32[1,128]{1,0:T(1,128)}', space=vmem, size = 0x200, scoped, tag = 'scratch operand']
  #allocation4 [shape = 'f32[1,256]{1,0:T(1,128)}', space=vmem, size = 0x400, scoped, tag = 'scratch operand']
  #allocation5 [shape = 's32[1]{0}', space=sflag, size = 0x4, scoped, tag = 'scoped memory for tpu_custom_call.1']
  #allocation6 [shape = 's32[1]{0:T(128)S(6)}', space=smem, size = 0x200, scoped, tag = 'prefetched SMEM operand 0']
  %s0 = inlined_call_operand.<no memory space> [shape: s32[1], index: 0, kind: input, shape index: {}]
  %s1 = inlined_call_operand.vmem [shape: f32[1,1,128], index: 1, kind: input, shape index: {}]
  %s2 = inlined_call_operand.hbm [shape: f32[1,8,128], index: 2, kind: input, shape index: {}]
  %s3 = inlined_call_operand.vmem [shape: f32[1,128], index: 3, kind: input, shape index: {}]
  %s4 = inlined_call_operand.vmem [shape: f32[1,128], index: 4, kind: input, shape index: {}]
  %s5 = inlined_call_operand.hbm [shape: bf16[256,512], index: 5, kind: input, shape index: {}]
  %s6 = inlined_call_operand.hbm [shape: bf16[128,128], index: 6, kind: input, shape index: {}]
  %s7 = inlined_call_operand.vmem [shape: f32[1,512], index: 7, kind: input, shape index: {}]
  %s8 = inlined_call_operand.hbm [shape: f32[1,1,128], index: 8, kind: output, shape index: {0}]
  %s9 = inlined_call_operand.hbm [shape: f32[1,1,128], index: 9, kind: output, shape index: {1}]
  %10 = xla_tuple %s8, %s9
  %s11 = sld [smem:[#allocation0]]
  $region62: #{tpu_custom_call.1} parent=0
    _
  %s13 = ssub.s32 1, %s11
  %s14 = scalar_select 0, %s13, %s11
  %15 = sst [smem:[#allocation6]] %s0
  $region1: #{tpu_custom_call.1} parent=0
    #allocation7 [shape = 'u8[4096]{0}', space=vmem, size = 0x1000, scoped, tag = 'input window, operand 2, single buffered']
    #allocation8 [shape = 's32[1]{0}', space=sflag, size = 0x4, scoped, tag = 'scoped memory for tpu_custom_call.1']
    #allocation9 [shape = 's32[1]{0}', space=sflag, size = 0x4, scoped, tag = 'scoped memory for tpu_custom_call.1']
    #allocation10 [shape = 'u8[262144]{0}', space=vmem, size = 0x40000, scoped, tag = 'input window, operand 5, single buffered']
    #allocation11 [shape = 's32[1]{0}', space=sflag, size = 0x4, scoped, tag = 'scoped memory for tpu_custom_call.1']
    #allocation12 [shape = 'u8[32768]{0}', space=vmem, size = 0x8000, scoped, tag = 'input window, operand 6, single buffered']
    #allocation13 [shape = 'u8[512]{0}', space=vmem, size = 0x400, scoped, tag = 'output window, operand 0, single buffered']
    #allocation14 [shape = 'u8[512]{0}', space=vmem, size = 0x400, scoped, tag = 'output window, operand 1, single buffered']
    #allocation15 [shape = 's32[1]{0}', space=sflag, size = 0x4, scoped, tag = 'scoped memory for tpu_custom_call.1']
    %16 = vsyncpa [#allocation8], 0
    %17 = vsyncpa [#allocation11], 0
    %18 = vsyncpa [#allocation9], 0
    %19 = vsyncpa [#allocation15], 0
    // Predicated region
    $region2: #{tpu_custom_call.1} parent=1 // pred_check
      _
    $region3: #{tpu_custom_call.1} parent=1 // pred_check_branch
      %21 = sbr.rel (0) target = $region5
    $region4: #{tpu_custom_call.1} parent=1 // pred_region
      _
    $region5: #{tpu_custom_call.1} parent=1 // pred_fallthru
      _
    // Predicated region
    $region6: #{tpu_custom_call.1} parent=1 // pred_check
      _
    $region7: #{tpu_custom_call.1} parent=1 // pred_check_branch
      %23 = sbr.rel (0) target = $region9
    $region8: #{tpu_custom_call.1} parent=1 // pred_region
      %s25 = ssub.s32 128, 128
      %26 = vsyncadd [#allocation8], %s25
      %s28 = sshll.u32 [#allocation7], 4
      %s29 = int_to_ptr.vmem [resolvable:$true] %s28
      %31 = dma.hbm_to_vmem [thread:$0]  %s2, 128, %s29, [#allocation8]
    $region9: #{tpu_custom_call.1} parent=1 // pred_fallthru
      _
    // Predicated region
    $region10: #{tpu_custom_call.1} parent=1 // pred_check
      _
    $region11: #{tpu_custom_call.1} parent=1 // pred_check_branch
      %33 = sbr.rel (0) target = $region13
    $region12: #{tpu_custom_call.1} parent=1 // pred_region
      _
    $region13: #{tpu_custom_call.1} parent=1 // pred_fallthru
      _
    // Predicated region
    $region14: #{tpu_custom_call.1} parent=1 // pred_check
      _
    $region15: #{tpu_custom_call.1} parent=1 // pred_check_branch
      %35 = sbr.rel (0) target = $region17
    $region16: #{tpu_custom_call.1} parent=1 // pred_region
      _
    $region17: #{tpu_custom_call.1} parent=1 // pred_fallthru
      _
    // Predicated region
    $region18: #{tpu_custom_call.1} parent=1 // pred_check
      _
    $region19: #{tpu_custom_call.1} parent=1 // pred_check_branch
      %37 = sbr.rel (0) target = $region21
    $region20: #{tpu_custom_call.1} parent=1 // pred_region
      %s39 = ssub.s32 8192, 8192
      %40 = vsyncadd [#allocation11], %s39
      %s41 = sshll.u32 [#allocation10], 4
      %s42 = int_to_ptr.vmem [resolvable:$true] %s41
      %47 = dma.hbm_to_vmem [thread:$0]  %s5, 8192, %s42, [#allocation11], 256, 256, 16
    $region21: #{tpu_custom_call.1} parent=1 // pred_fallthru
      _
    // Predicated region
    $region22: #{tpu_custom_call.1} parent=1 // pred_check
      _
    $region23: #{tpu_custom_call.1} parent=1 // pred_check_branch
      %49 = sbr.rel (0) target = $region25
    $region24: #{tpu_custom_call.1} parent=1 // pred_region
      %s51 = ssub.s32 1024, 1024
      %52 = vsyncadd [#allocation11], %s51
      %s53 = sshll.u32 [#allocation12], 4
      %s54 = int_to_ptr.vmem [resolvable:$true] %s53
      %59 = dma.hbm_to_vmem [thread:$0]  %s6, 1024, %s54, [#allocation11], 64, 64, 4
    $region25: #{tpu_custom_call.1} parent=1 // pred_fallthru
      _
    // Predicated region
    $region26: #{tpu_custom_call.1} parent=1 // pred_check
      _
    $region27: #{tpu_custom_call.1} parent=1 // pred_check_branch
      %61 = sbr.rel (0) target = $region29
    $region28: #{tpu_custom_call.1} parent=1 // pred_region
      _
    $region29: #{tpu_custom_call.1} parent=1 // pred_fallthru
      _
    // Predicated region
    $region30: #{tpu_custom_call.1} parent=1 // pred_check
      _
    $region31: #{tpu_custom_call.1} parent=1 // pred_check_branch
      %63 = sbr.rel (0) target = $region33
    $region32: #{tpu_custom_call.1} parent=1 // pred_region
      %64 = dma.done [#allocation8], 128
    $region33: #{tpu_custom_call.1} parent=1 // pred_fallthru
      _
    // Predicated region
    $region34: #{tpu_custom_call.1} parent=1 // pred_check
      _
    $region35: #{tpu_custom_call.1} parent=1 // pred_check_branch
      %66 = sbr.rel (0) target = $region37
    $region36: #{tpu_custom_call.1} parent=1 // pred_region
      %67 = dma.done [#allocation11], 8192
    $region37: #{tpu_custom_call.1} parent=1 // pred_fallthru
      _
    // Predicated region
    $region38: #{tpu_custom_call.1} parent=1 // pred_check
      _
    $region39: #{tpu_custom_call.1} parent=1 // pred_check_branch
      %69 = sbr.rel (0) target = $region41
    $region40: #{tpu_custom_call.1} parent=1 // pred_region
      %70 = dma.done [#allocation11], 1024
    $region41: #{tpu_custom_call.1} parent=1 // pred_fallthru
      _
    %p72 = scmp.eq.s32.totalorder 0, 0
    // Predicated region
    $region42: #{tpu_custom_call.1} parent=1 // pred_check
      %p73 = pneg %p72
    $region43: #{tpu_custom_call.1} parent=1 // pred_check_branch
      %75 = sbr.rel (%p73) target = $region45
    $region44: #{tpu_custom_call.1} parent=1 // pred_region
      %v76 = vld [vmem:[%s3] sm:$0x1]
      %77 = vst [vmem:[#allocation2] sm:$0x1] %v76
      %v78 = vld [vmem:[%s4] sm:$0x1]
      %79 = vst [vmem:[#allocation3] sm:$0x1] %v78
    $region45: #{tpu_custom_call.1} parent=1 // pred_fallthru
      _
    %s80 = sld [smem:[#allocation6]]
    %v81 = vld [vmem:[#allocation2] sm:$0x1]
    %v82 = vld [vmem:[#allocation3] sm:$0x1]
    %v83 = vld [vmem:[%s1] sm:$0x1]
    %v84 = vlaneseq
    %vm85 = vcmp.ge.s32.totalorder %v84, 0
    %vm86 = vcmp.lt.s32.totalorder %v84, 128
    %vm87 = vmand %vm85, %vm86
    %88 = vst.msk [vmem:[#allocation4] sm:$0x1] %vm87, %v83
    %89 = vst.msk [vmem:[#allocation4 + $0x1] sm:$0x1] %vm87, %v81
    %v90 = vld [vmem:[#allocation4] sm:$0x3]
    %v92 = vlaneseq
    %v93 = vshrl.u32 %v92, 7
    %v94 = vsub.s32 0, %v93
    %v95 = vrot.slane %v90, %v94
    %v96 = vlaneseq
    %v97 = vshrl.u32 %v96, 7
    %v98 = vsub.s32 1, %v97
    %v99 = vrot.slane %v90, %v98
    %v102 = vpack.c.bf16 %v95, %v95
    %v103 = vpack.c.bf16 %v99, %v99
    %v104 = vld [vmem:[#allocation10] sm:$0xff]
    %v105 = vld [vmem:[#allocation10 + $0x8] sm:$0xff]
    %v106 = vld [vmem:[#allocation10 + $0x10] sm:$0xff]
    %v107 = vld [vmem:[#allocation10 + $0x18] sm:$0xff]
    %v108 = vld [vmem:[#allocation10 + $0x20] sm:$0xff]
    %v109 = vld [vmem:[#allocation10 + $0x28] sm:$0xff]
    %v110 = vld [vmem:[#allocation10 + $0x30] sm:$0xff]
    %v111 = vld [vmem:[#allocation10 + $0x38] sm:$0xff]
    %v112 = vld [vmem:[#allocation10 + $0x40] sm:$0xff]
    %v113 = vld [vmem:[#allocation10 + $0x48] sm:$0xff]
    %v114 = vld [vmem:[#allocation10 + $0x50] sm:$0xff]
    %v115 = vld [vmem:[#allocation10 + $0x58] sm:$0xff]
    %v116 = vld [vmem:[#allocation10 + $0x60] sm:$0xff]
    %v117 = vld [vmem:[#allocation10 + $0x68] sm:$0xff]
    %v118 = vld [vmem:[#allocation10 + $0x70] sm:$0xff]
    %v119 = vld [vmem:[#allocation10 + $0x78] sm:$0xff]
    %v120 = vld [vmem:[#allocation10 + $0x80] sm:$0xff]
    %v121 = vld [vmem:[#allocation10 + $0x88] sm:$0xff]
    %v122 = vld [vmem:[#allocation10 + $0x90] sm:$0xff]
    %v123 = vld [vmem:[#allocation10 + $0x98] sm:$0xff]
    %v124 = vld [vmem:[#allocation10 + $0xa0] sm:$0xff]
    %v125 = vld [vmem:[#allocation10 + $0xa8] sm:$0xff]
    %v126 = vld [vmem:[#allocation10 + $0xb0] sm:$0xff]
    %v127 = vld [vmem:[#allocation10 + $0xb8] sm:$0xff]
    %v128 = vld [vmem:[#allocation10 + $0xc0] sm:$0xff]
    %v129 = vld [vmem:[#allocation10 + $0xc8] sm:$0xff]
    %v130 = vld [vmem:[#allocation10 + $0xd0] sm:$0xff]
    %v131 = vld [vmem:[#allocation10 + $0xd8] sm:$0xff]
    %v132 = vld [vmem:[#allocation10 + $0xe0] sm:$0xff]
    %v133 = vld [vmem:[#allocation10 + $0xe8] sm:$0xff]
    %v134 = vld [vmem:[#allocation10 + $0xf0] sm:$0xff]
    %v135 = vld [vmem:[#allocation10 + $0xf8] sm:$0xff]
    %v136 = vld [vmem:[#allocation10 + $0x100] sm:$0xff]
    %v137 = vld [vmem:[#allocation10 + $0x108] sm:$0xff]
    %v138 = vld [vmem:[#allocation10 + $0x110] sm:$0xff]
    %v139 = vld [vmem:[#allocation10 + $0x118] sm:$0xff]
    %v140 = vld [vmem:[#allocation10 + $0x120] sm:$0xff]
    %v141 = vld [vmem:[#allocation10 + $0x128] sm:$0xff]
    %v142 = vld [vmem:[#allocation10 + $0x130] sm:$0xff]
    %v143 = vld [vmem:[#allocation10 + $0x138] sm:$0xff]
    %v144 = vld [vmem:[#allocation10 + $0x140] sm:$0xff]
    %v145 = vld [vmem:[#allocation10 + $0x148] sm:$0xff]
    %v146 = vld [vmem:[#allocation10 + $0x150] sm:$0xff]
    %v147 = vld [vmem:[#allocation10 + $0x158] sm:$0xff]
    %v148 = vld [vmem:[#allocation10 + $0x160] sm:$0xff]
    %v149 = vld [vmem:[#allocation10 + $0x168] sm:$0xff]
    %v150 = vld [vmem:[#allocation10 + $0x170] sm:$0xff]
    %v151 = vld [vmem:[#allocation10 + $0x178] sm:$0xff]
    %v152 = vld [vmem:[#allocation10 + $0x180] sm:$0xff]
    %v153 = vld [vmem:[#allocation10 + $0x188] sm:$0xff]
    %v154 = vld [vmem:[#allocation10 + $0x190] sm:$0xff]
    %v155 = vld [vmem:[#allocation10 + $0x198] sm:$0xff]
    %v156 = vld [vmem:[#allocation10 + $0x1a0] sm:$0xff]
    %v157 = vld [vmem:[#allocation10 + $0x1a8] sm:$0xff]
    %v158 = vld [vmem:[#allocation10 + $0x1b0] sm:$0xff]
    %v159 = vld [vmem:[#allocation10 + $0x1b8] sm:$0xff]
    %v160 = vld [vmem:[#allocation10 + $0x1c0] sm:$0xff]
    %v161 = vld [vmem:[#allocation10 + $0x1c8] sm:$0xff]
    %v162 = vld [vmem:[#allocation10 + $0x1d0] sm:$0xff]
    %v163 = vld [vmem:[#allocation10 + $0x1d8] sm:$0xff]
    %v164 = vld [vmem:[#allocation10 + $0x1e0] sm:$0xff]
    %v165 = vld [vmem:[#allocation10 + $0x1e8] sm:$0xff]
    %v166 = vld [vmem:[#allocation10 + $0x1f0] sm:$0xff]
    %v167 = vld [vmem:[#allocation10 + $0x1f8] sm:$0xff]
    %v168 = vld [vmem:[%s7] sm:$0xf]
    %v233 = vunpack.c.l.b16 %v104
    %v234 = vunpack.c.h.b16 %v104
    %v235 = vunpack.c.l.b16 %v105
    %v236 = vunpack.c.h.b16 %v105
    %v237 = vunpack.c.l.b16 %v106
    %v238 = vunpack.c.h.b16 %v106
    %v239 = vunpack.c.l.b16 %v107
    %v240 = vunpack.c.h.b16 %v107
    %v241 = vunpack.c.l.b16 %v108
    %v242 = vunpack.c.h.b16 %v108
    %v243 = vunpack.c.l.b16 %v109
    %v244 = vunpack.c.h.b16 %v109
    %v245 = vunpack.c.l.b16 %v110
    %v246 = vunpack.c.h.b16 %v110
    %v247 = vunpack.c.l.b16 %v111
    %v248 = vunpack.c.h.b16 %v111
    %v249 = vunpack.c.l.b16 %v112
    %v250 = vunpack.c.h.b16 %v112
    %v251 = vunpack.c.l.b16 %v113
    %v252 = vunpack.c.h.b16 %v113
    %v253 = vunpack.c.l.b16 %v114
    %v254 = vunpack.c.h.b16 %v114
    %v255 = vunpack.c.l.b16 %v115
    %v256 = vunpack.c.h.b16 %v115
    %v257 = vunpack.c.l.b16 %v116
    %v258 = vunpack.c.h.b16 %v116
    %v259 = vunpack.c.l.b16 %v117
    %v260 = vunpack.c.h.b16 %v117
    %v261 = vunpack.c.l.b16 %v118
    %v262 = vunpack.c.h.b16 %v118
    %v263 = vunpack.c.l.b16 %v119
    %v264 = vunpack.c.h.b16 %v119
    %v265 = vunpack.c.l.b16 %v120
    %v266 = vunpack.c.h.b16 %v120
    %v267 = vunpack.c.l.b16 %v121
    %v268 = vunpack.c.h.b16 %v121
    %v269 = vunpack.c.l.b16 %v122
    %v270 = vunpack.c.h.b16 %v122
    %v271 = vunpack.c.l.b16 %v123
    %v272 = vunpack.c.h.b16 %v123
    %v273 = vunpack.c.l.b16 %v124
    %v274 = vunpack.c.h.b16 %v124
    %v275 = vunpack.c.l.b16 %v125
    %v276 = vunpack.c.h.b16 %v125
    %v277 = vunpack.c.l.b16 %v126
    %v278 = vunpack.c.h.b16 %v126
    %v279 = vunpack.c.l.b16 %v127
    %v280 = vunpack.c.h.b16 %v127
    %v281 = vunpack.c.l.b16 %v128
    %v282 = vunpack.c.h.b16 %v128
    %v283 = vunpack.c.l.b16 %v129
    %v284 = vunpack.c.h.b16 %v129
    %v285 = vunpack.c.l.b16 %v130
    %v286 = vunpack.c.h.b16 %v130
    %v287 = vunpack.c.l.b16 %v131
    %v288 = vunpack.c.h.b16 %v131
    %v289 = vunpack.c.l.b16 %v132
    %v290 = vunpack.c.h.b16 %v132
    %v291 = vunpack.c.l.b16 %v133
    %v292 = vunpack.c.h.b16 %v133
    %v293 = vunpack.c.l.b16 %v134
    %v294 = vunpack.c.h.b16 %v134
    %v295 = vunpack.c.l.b16 %v135
    %v296 = vunpack.c.h.b16 %v135
    %v297 = vunpack.c.l.b16 %v136
    %v298 = vunpack.c.h.b16 %v136
    %v299 = vunpack.c.l.b16 %v137
    %v300 = vunpack.c.h.b16 %v137
    %v301 = vunpack.c.l.b16 %v138
    %v302 = vunpack.c.h.b16 %v138
    %v303 = vunpack.c.l.b16 %v139
    %v304 = vunpack.c.h.b16 %v139
    %v305 = vunpack.c.l.b16 %v140
    %v306 = vunpack.c.h.b16 %v140
    %v307 = vunpack.c.l.b16 %v141
    %v308 = vunpack.c.h.b16 %v141
    %v309 = vunpack.c.l.b16 %v142
    %v310 = vunpack.c.h.b16 %v142
    %v311 = vunpack.c.l.b16 %v143
    %v312 = vunpack.c.h.b16 %v143
    %v313 = vunpack.c.l.b16 %v144
    %v314 = vunpack.c.h.b16 %v144
    %v315 = vunpack.c.l.b16 %v145
    %v316 = vunpack.c.h.b16 %v145
    %v317 = vunpack.c.l.b16 %v146
    %v318 = vunpack.c.h.b16 %v146
    %v319 = vunpack.c.l.b16 %v147
    %v320 = vunpack.c.h.b16 %v147
    %v321 = vunpack.c.l.b16 %v148
    %v322 = vunpack.c.h.b16 %v148
    %v323 = vunpack.c.l.b16 %v149
    %v324 = vunpack.c.h.b16 %v149
    %v325 = vunpack.c.l.b16 %v150
    %v326 = vunpack.c.h.b16 %v150
    %v327 = vunpack.c.l.b16 %v151
    %v328 = vunpack.c.h.b16 %v151
    %v329 = vunpack.c.l.b16 %v152
    %v330 = vunpack.c.h.b16 %v152
    %v331 = vunpack.c.l.b16 %v153
    %v332 = vunpack.c.h.b16 %v153
    %v333 = vunpack.c.l.b16 %v154
    %v334 = vunpack.c.h.b16 %v154
    %v335 = vunpack.c.l.b16 %v155
    %v336 = vunpack.c.h.b16 %v155
    %v337 = vunpack.c.l.b16 %v156
    %v338 = vunpack.c.h.b16 %v156
    %v339 = vunpack.c.l.b16 %v157
    %v340 = vunpack.c.h.b16 %v157
    %v341 = vunpack.c.l.b16 %v158
    %v342 = vunpack.c.h.b16 %v158
    %v343 = vunpack.c.l.b16 %v159
    %v344 = vunpack.c.h.b16 %v159
    %v345 = vunpack.c.l.b16 %v160
    %v346 = vunpack.c.h.b16 %v160
    %v347 = vunpack.c.l.b16 %v161
    %v348 = vunpack.c.h.b16 %v161
    %v349 = vunpack.c.l.b16 %v162
    %v350 = vunpack.c.h.b16 %v162
    %v351 = vunpack.c.l.b16 %v163
    %v352 = vunpack.c.h.b16 %v163
    %v353 = vunpack.c.l.b16 %v164
    %v354 = vunpack.c.h.b16 %v164
    %v355 = vunpack.c.l.b16 %v165
    %v356 = vunpack.c.h.b16 %v165
    %v357 = vunpack.c.l.b16 %v166
    %v358 = vunpack.c.h.b16 %v166
    %v359 = vunpack.c.l.b16 %v167
    %v360 = vunpack.c.h.b16 %v167
    %v361 = vpack.c.b16 %v237, %v233
    %v362 = vpack.c.b16 %v238, %v234
    %v363 = vpack.c.b16 %v239, %v235
    %v364 = vpack.c.b16 %v240, %v236
    %v365 = vpack.c.b16 %v245, %v241
    %v366 = vpack.c.b16 %v246, %v242
    %v367 = vpack.c.b16 %v247, %v243
    %v368 = vpack.c.b16 %v248, %v244
    %v369 = vpack.c.b16 %v253, %v249
    %v370 = vpack.c.b16 %v254, %v250
    %v371 = vpack.c.b16 %v255, %v251
    %v372 = vpack.c.b16 %v256, %v252
    %v373 = vpack.c.b16 %v261, %v257
    %v374 = vpack.c.b16 %v262, %v258
    %v375 = vpack.c.b16 %v263, %v259
    %v376 = vpack.c.b16 %v264, %v260
    %v377 = vpack.c.b16 %v269, %v265
    %v378 = vpack.c.b16 %v270, %v266
    %v379 = vpack.c.b16 %v271, %v267
    %v380 = vpack.c.b16 %v272, %v268
    %v381 = vpack.c.b16 %v277, %v273
    %v382 = vpack.c.b16 %v278, %v274
    %v383 = vpack.c.b16 %v279, %v275
    %v384 = vpack.c.b16 %v280, %v276
    %v385 = vpack.c.b16 %v285, %v281
    %v386 = vpack.c.b16 %v286, %v282
    %v387 = vpack.c.b16 %v287, %v283
    %v388 = vpack.c.b16 %v288, %v284
    %v389 = vpack.c.b16 %v293, %v289
    %v390 = vpack.c.b16 %v294, %v290
    %v391 = vpack.c.b16 %v295, %v291
    %v392 = vpack.c.b16 %v296, %v292
    %v393 = vpack.c.b16 %v301, %v297
    %v394 = vpack.c.b16 %v302, %v298
    %v395 = vpack.c.b16 %v303, %v299
    %v396 = vpack.c.b16 %v304, %v300
    %v397 = vpack.c.b16 %v309, %v305
    %v398 = vpack.c.b16 %v310, %v306
    %v399 = vpack.c.b16 %v311, %v307
    %v400 = vpack.c.b16 %v312, %v308
    %v401 = vpack.c.b16 %v317, %v313
    %v402 = vpack.c.b16 %v318, %v314
    %v403 = vpack.c.b16 %v319, %v315
    %v404 = vpack.c.b16 %v320, %v316
    %v405 = vpack.c.b16 %v325, %v321
    %v406 = vpack.c.b16 %v326, %v322
    %v407 = vpack.c.b16 %v327, %v323
    %v408 = vpack.c.b16 %v328, %v324
    %v409 = vpack.c.b16 %v333, %v329
    %v410 = vpack.c.b16 %v334, %v330
    %v411 = vpack.c.b16 %v335, %v331
    %v412 = vpack.c.b16 %v336, %v332
    %v413 = vpack.c.b16 %v341, %v337
    %v414 = vpack.c.b16 %v342, %v338
    %v415 = vpack.c.b16 %v343, %v339
    %v416 = vpack.c.b16 %v344, %v340
    %v417 = vpack.c.b16 %v349, %v345
    %v418 = vpack.c.b16 %v350, %v346
    %v419 = vpack.c.b16 %v351, %v347
    %v420 = vpack.c.b16 %v352, %v348
    %v421 = vpack.c.b16 %v357, %v353
    %v422 = vpack.c.b16 %v358, %v354
    %v423 = vpack.c.b16 %v359, %v355
    %v424 = vpack.c.b16 %v360, %v356
    %v490 = vlaneseq
    %v491 = vshrl.u32 %v490, 7
    %v492 = vsub.s32 0, %v491
    %v493 = vrot.slane %v168, %v492
    %v494 = vlaneseq
    %v495 = vshrl.u32 %v494, 7
    %v496 = vsub.s32 1, %v495
    %v497 = vrot.slane %v168, %v496
    %v498 = vlaneseq
    %v499 = vshrl.u32 %v498, 7
    %v500 = vsub.s32 2, %v499
    %v501 = vrot.slane %v168, %v500
    %v502 = vlaneseq
    %v503 = vshrl.u32 %v502, 7
    %v504 = vsub.s32 3, %v503
    %v505 = vrot.slane %v168, %v504
    %510 = vmatprep.subr.bf16.mxu0 %v390
    %511 = vmatpush1.bf16.msra.mxu0 %v389
    %512 = vmatprep.subr.bf16.mxu0 %v386
    %513 = vmatpush1.bf16.msra.mxu0 %v385
    %514 = vmatprep.subr.bf16.mxu0 %v382
    %515 = vmatpush1.bf16.msra.mxu0 %v381
    %516 = vmatprep.subr.bf16.mxu0 %v378
    %517 = vmatpush1.bf16.msra.mxu0 %v377
    %518 = vmatprep.subr.bf16.mxu0 %v374
    %519 = vmatpush1.bf16.msra.mxu0 %v373
    %520 = vmatprep.subr.bf16.mxu0 %v370
    %521 = vmatpush1.bf16.msra.mxu0 %v369
    %522 = vmatprep.subr.bf16.mxu0 %v366
    %523 = vmatpush1.bf16.msra.mxu0 %v365
    %524 = vmatprep.subr.bf16.mxu0 %v362
    %525 = vmatpush1.bf16.msra.mxu0 %v361
    %526 = vmatprep.subr.bf16.mxu0 %v422
    %527 = vmatpush2.bf16.msra.mxu0 %v421
    %528 = vmatprep.subr.bf16.mxu0 %v418
    %529 = vmatpush2.bf16.msra.mxu0 %v417
    %530 = vmatprep.subr.bf16.mxu0 %v414
    %531 = vmatpush2.bf16.msra.mxu0 %v413
    %532 = vmatprep.subr.bf16.mxu0 %v410
    %533 = vmatpush2.bf16.msra.mxu0 %v409
    %534 = vmatprep.subr.bf16.mxu0 %v406
    %535 = vmatpush2.bf16.msra.mxu0 %v405
    %536 = vmatprep.subr.bf16.mxu0 %v402
    %537 = vmatpush2.bf16.msra.mxu0 %v401
    %538 = vmatprep.subr.bf16.mxu0 %v398
    %539 = vmatpush2.bf16.msra.mxu0 %v397
    %540 = vmatprep.subr.bf16.mxu0 %v394
    %541 = vmatpush2.bf16.msra.mxu0 %v393
    %542 = vmatprep.mubr.bf16.mxu0 %v103
    %543 = vmatmul.mubr.bf16.gmra.mxu0 %v102
    %v544 = vpop.f32.mrf.mxu0
    %v545 = vadd.f32 %v493, %v544
    %v546 = vpop.f32.mrf.mxu0
    %v547 = vadd.f32 %v497, %v546
    %v548 = vpop.f32.mrf.mxu0
    %v549 = vpop.f32.mrf.mxu0
    %550 = vdwg.mxu0
    %551 = vmatprep.subr.bf16.mxu0 %v392
    %552 = vmatpush1.bf16.msra.mxu0 %v391
    %553 = vmatprep.subr.bf16.mxu0 %v388
    %554 = vmatpush1.bf16.msra.mxu0 %v387
    %555 = vmatprep.subr.bf16.mxu0 %v384
    %556 = vmatpush1.bf16.msra.mxu0 %v383
    %557 = vmatprep.subr.bf16.mxu0 %v380
    %558 = vmatpush1.bf16.msra.mxu0 %v379
    %559 = vmatprep.subr.bf16.mxu0 %v376
    %560 = vmatpush1.bf16.msra.mxu0 %v375
    %561 = vmatprep.subr.bf16.mxu0 %v372
    %562 = vmatpush1.bf16.msra.mxu0 %v371
    %563 = vmatprep.subr.bf16.mxu0 %v368
    %564 = vmatpush1.bf16.msra.mxu0 %v367
    %565 = vmatprep.subr.bf16.mxu0 %v364
    %566 = vmatpush1.bf16.msra.mxu0 %v363
    %567 = vmatprep.subr.bf16.mxu0 %v424
    %568 = vmatpush2.bf16.msra.mxu0 %v423
    %569 = vmatprep.subr.bf16.mxu0 %v420
    %570 = vmatpush2.bf16.msra.mxu0 %v419
    %571 = vmatprep.subr.bf16.mxu0 %v416
    %572 = vmatpush2.bf16.msra.mxu0 %v415
    %573 = vmatprep.subr.bf16.mxu0 %v412
    %574 = vmatpush2.bf16.msra.mxu0 %v411
    %575 = vmatprep.subr.bf16.mxu0 %v408
    %576 = vmatpush2.bf16.msra.mxu0 %v407
    %577 = vmatprep.subr.bf16.mxu0 %v404
    %578 = vmatpush2.bf16.msra.mxu0 %v403
    %579 = vmatprep.subr.bf16.mxu0 %v400
    %580 = vmatpush2.bf16.msra.mxu0 %v399
    %581 = vmatprep.subr.bf16.mxu0 %v396
    %582 = vmatpush2.bf16.msra.mxu0 %v395
    %583 = vmatprep.mubr.bf16.mxu0 %v103
    %584 = vmatmul.mubr.bf16.gmra.mxu0 %v102
    %v585 = vpop.f32.mrf.mxu0
    %v586 = vadd.f32 %v501, %v585
    %v587 = vpop.f32.mrf.mxu0
    %v588 = vadd.f32 %v505, %v587
    %v589 = vpop.f32.mrf.mxu0
    %v590 = vpop.f32.mrf.mxu0
    %591 = vdwg.mxu0
    %v592 = vxor.u32 %v545, 2147483648
    %v593 = vmul.f32 %v592, 1.442695
    %v594 = vpow.pop %v593
    %v595 = vadd.f32 %v594, 1.0
    %v596 = vrcp.pop %v595
    %v597 = vmul.f32 1.0, %v596
    %v598 = vxor.u32 %v547, 2147483648
    %v599 = vmul.f32 %v598, 1.442695
    %v600 = vpow.pop %v599
    %v601 = vadd.f32 %v600, 1.0
    %v602 = vrcp.pop %v601
    %v603 = vmul.f32 1.0, %v602
    %v604 = vtanh.pop %v586
    %v605 = vld [vmem:[#allocation7] sm:$0xff]
    %v606 = vpack.c.bf16 %v605, %v605
    %v607 = vld [vmem:[#allocation12] sm:$0xf]
    %v608 = vld [vmem:[#allocation12 + $0x4] sm:$0xf]
    %v609 = vld [vmem:[#allocation12 + $0x8] sm:$0xf]
    %v610 = vld [vmem:[#allocation12 + $0xc] sm:$0xf]
    %v611 = vld [vmem:[#allocation12 + $0x10] sm:$0xf]
    %v612 = vld [vmem:[#allocation12 + $0x14] sm:$0xf]
    %v613 = vld [vmem:[#allocation12 + $0x18] sm:$0xf]
    %v614 = vld [vmem:[#allocation12 + $0x1c] sm:$0xf]
    %v615 = vld [vmem:[#allocation12 + $0x20] sm:$0xf]
    %v616 = vld [vmem:[#allocation12 + $0x24] sm:$0xf]
    %v617 = vld [vmem:[#allocation12 + $0x28] sm:$0xf]
    %v618 = vld [vmem:[#allocation12 + $0x2c] sm:$0xf]
    %v619 = vld [vmem:[#allocation12 + $0x30] sm:$0xf]
    %v620 = vld [vmem:[#allocation12 + $0x34] sm:$0xf]
    %v621 = vld [vmem:[#allocation12 + $0x38] sm:$0xf]
    %v622 = vld [vmem:[#allocation12 + $0x3c] sm:$0xf]
    %v639 = vunpack.c.l.b16 %v607
    %v640 = vunpack.c.l.b16 %v608
    %v641 = vunpack.c.l.b16 %v609
    %v642 = vunpack.c.l.b16 %v610
    %v643 = vunpack.c.l.b16 %v611
    %v644 = vunpack.c.l.b16 %v612
    %v645 = vunpack.c.l.b16 %v613
    %v646 = vunpack.c.l.b16 %v614
    %v647 = vunpack.c.l.b16 %v615
    %v648 = vunpack.c.l.b16 %v616
    %v649 = vunpack.c.l.b16 %v617
    %v650 = vunpack.c.l.b16 %v618
    %v651 = vunpack.c.l.b16 %v619
    %v652 = vunpack.c.l.b16 %v620
    %v653 = vunpack.c.l.b16 %v621
    %v654 = vunpack.c.l.b16 %v622
    %v655 = vpack.c.b16 %v640, %v639
    %v656 = vpack.c.b16 %v642, %v641
    %v657 = vpack.c.b16 %v644, %v643
    %v658 = vpack.c.b16 %v646, %v645
    %v659 = vpack.c.b16 %v648, %v647
    %v660 = vpack.c.b16 %v650, %v649
    %v661 = vpack.c.b16 %v652, %v651
    %v662 = vpack.c.b16 %v654, %v653
    %671 = vmatprep.subr.bf16.mxu0 0
    %672 = vmatpush1.bf16.msra.mxu0 %v662
    %673 = vmatprep.subr.bf16.mxu0 0
    %674 = vmatpush1.bf16.msra.mxu0 %v661
    %675 = vmatprep.subr.bf16.mxu0 0
    %676 = vmatpush1.bf16.msra.mxu0 %v660
    %677 = vmatprep.subr.bf16.mxu0 0
    %678 = vmatpush1.bf16.msra.mxu0 %v659
    %679 = vmatprep.subr.bf16.mxu0 0
    %680 = vmatpush1.bf16.msra.mxu0 %v658
    %681 = vmatprep.subr.bf16.mxu0 0
    %682 = vmatpush1.bf16.msra.mxu0 %v657
    %683 = vmatprep.subr.bf16.mxu0 0
    %684 = vmatpush1.bf16.msra.mxu0 %v656
    %685 = vmatprep.subr.bf16.mxu0 0
    %686 = vmatpush1.bf16.msra.mxu0 %v655
    %687 = vmatprep.subr.bf16.mxu0 0
    %688 = vmatpush2.bf16.msra.mxu0 0
    %689 = vmatprep.subr.bf16.mxu0 0
    %690 = vmatpush2.bf16.msra.mxu0 0
    %691 = vmatprep.subr.bf16.mxu0 0
    %692 = vmatpush2.bf16.msra.mxu0 0
    %693 = vmatprep.subr.bf16.mxu0 0
    %694 = vmatpush2.bf16.msra.mxu0 0
    %695 = vmatprep.subr.bf16.mxu0 0
    %696 = vmatpush2.bf16.msra.mxu0 0
    %697 = vmatprep.subr.bf16.mxu0 0
    %698 = vmatpush2.bf16.msra.mxu0 0
    %699 = vmatprep.subr.bf16.mxu0 0
    %700 = vmatpush2.bf16.msra.mxu0 0
    %701 = vmatprep.subr.bf16.mxu0 0
    %702 = vmatpush2.bf16.msra.mxu0 0
    %703 = vmatprep.mubr.bf16.mxu0 0
    %704 = vmatmul.mubr.bf16.gmra.mxu0 %v606
    %v705 = vpop.f32.mrf.mxu0
    %v706 = vadd.f32 0.0, %v705
    %v707 = vpop.f32.mrf.mxu0
    %v708 = vpop.f32.mrf.mxu0
    %v709 = vpop.f32.mrf.mxu0
    %710 = vdwg.mxu0
    %v711 = vlaneseq
    %v712 = vshrl.u32 %v711, 7
    %v713 = vsub.s32 0, %v712
    %v714 = vrot.slane %v588, %v713
    %v715 = vadd.f32 %v714, %v706
    %v716 = vxor.u32 %v715, 2147483648
    %v717 = vmul.f32 %v716, 1.442695
    %v718 = vpow.pop %v717
    %v719 = vadd.f32 %v718, 1.0
    %v720 = vrcp.pop %v719
    %v721 = vmul.f32 1.0, %v720
    %v722 = vlaneseq
    %v723 = vshrl.u32 %v722, 7
    %v724 = vstv %s80
    %vm725 = vcmp.lt.s32.totalorder %v723, %v724
    %v726 = vmul.f32 %v597, 1.442695
    %v727 = vpow.pop %v726
    %v728 = vmul.f32 %v721, 1.442695
    %v729 = vpow.pop %v728
    %v730 = vsel %vm725, %v729, 0.0
    %v731 = vrot.slane %v730, 4
    %v732 = vadd.f32 %v730, %v731
    %v733 = vrot.slane %v732, 2
    %v734 = vadd.f32 %v732, %v733
    %v735 = vrot.slane %v734, 1
    %v736 = vadd.f32 %v734, %v735
    %v737 = vadd.f32 %v727, %v736
    %v738 = vrcp.pop %v737
    %v739 = vmul.f32 %v604, %v727
    %v740 = vmul.f32 %v605, %v730
    %v741 = vrot.slane %v740, 4
    %v742 = vadd.f32 %v740, %v741
    %v743 = vrot.slane %v742, 2
    %v744 = vadd.f32 %v742, %v743
    %v745 = vrot.slane %v744, 1
    %v746 = vadd.f32 %v744, %v745
    %v747 = vadd.f32 %v739, %v746
    %v748 = vmul.f32 %v747, %v738
    %v749 = vsub.f32 1.0, %v597
    %v750 = vmul.f32 %v749, %v82
    %v751 = vmul.f32 %v597, %v604
    %v752 = vadd.f32 %v750, %v751
    %p753 = scmp.gt.s32.totalorder %s80, 0
    %s754 = scalar_select %p753, 1, 0
    %s755 = scvt.s32.f32 %s754
    %v756 = vstv %s755
    %v757 = vmul.f32 %v756, %v748
    %s758 = ssub.f32 1.0, %s755
    %v759 = vstv %s758
    %v760 = vmul.f32 %v759, %v752
    %v761 = vadd.f32 %v757, %v760
    %v762 = vtanh.pop %v761
    %v763 = vmul.f32 %v603, %v762
    %764 = vst [vmem:[#allocation2] sm:$0x1] %v763
    %765 = vst [vmem:[#allocation3] sm:$0x1] %v761
    %766 = vst [vmem:[#allocation13] sm:$0x1] %v763
    %767 = vst [vmem:[#allocation14] sm:$0x1] %v761
    // Predicated region
    $region46: #{tpu_custom_call.1} parent=1 // pred_check
      _
    $region47: #{tpu_custom_call.1} parent=1 // pred_check_branch
      %769 = sbr.rel (0) target = $region49
    $region48: #{tpu_custom_call.1} parent=1 // pred_region
      %s771 = ssub.s32 16, 16
      %772 = vsyncadd [#allocation9], %s771
      %s774 = sshll.u32 [#allocation13], 4
      %s775 = int_to_ptr.vmem [resolvable:$true] %s774
      %777 = dma.vmem_to_hbm [thread:$0]  %s775, 16, %s8, [#allocation9]
    $region49: #{tpu_custom_call.1} parent=1 // pred_fallthru
      _
    // Predicated region
    $region50: #{tpu_custom_call.1} parent=1 // pred_check
      _
    $region51: #{tpu_custom_call.1} parent=1 // pred_check_branch
      %779 = sbr.rel (0) target = $region53
    $region52: #{tpu_custom_call.1} parent=1 // pred_region
      %s781 = ssub.s32 16, 16
      %782 = vsyncadd [#allocation15], %s781
      %s784 = sshll.u32 [#allocation14], 4
      %s785 = int_to_ptr.vmem [resolvable:$true] %s784
      %787 = dma.vmem_to_hbm [thread:$0]  %s785, 16, %s9, [#allocation15]
    $region53: #{tpu_custom_call.1} parent=1 // pred_fallthru
      _
    // Predicated region
    $region54: #{tpu_custom_call.1} parent=1 // pred_check
      _
    $region55: #{tpu_custom_call.1} parent=1 // pred_check_branch
      %789 = sbr.rel (0) target = $region57
    $region56: #{tpu_custom_call.1} parent=1 // pred_region
      %790 = dma.done [#allocation9], 16
    $region57: #{tpu_custom_call.1} parent=1 // pred_fallthru
      _
    // Predicated region
    $region58: #{tpu_custom_call.1} parent=1 // pred_check
      _
    $region59: #{tpu_custom_call.1} parent=1 // pred_check_branch
      %792 = sbr.rel (0) target = $region61
    $region60: #{tpu_custom_call.1} parent=1 // pred_region
      %793 = dma.done [#allocation15], 16
    $region61: #{tpu_custom_call.1} parent=1 // pred_fallthru
      _
    %794 = vsyncpa [#allocation8], 1
    %795 = vsyncpa [#allocation11], 1
    %796 = vsyncpa [#allocation9], 1
    %797 = vsyncpa [#allocation15], 1

</llo_original>
